<compile_context>
chip_gen: v5e
topology: v5e:2x2
jax: 0.10.0
libtpu: 0.0.40
codegen_flags: <defaults>
</compile_context>

<pallas_src>
import jax
import jax.numpy as jnp
from jax.experimental import pallas as pl
from jax.experimental.pallas import tpu as pltpu

BN_EPS = 1e-5


def _round_up(v, m):
    return (v + m - 1) // m * m


# ------------------------------ fused kernel ------------------------------
def make_fused_kernel(num_layers, num_relations, hidden_dim, n_nodes, out_pad):
    L, R, dh, N = num_layers, num_relations, hidden_dim, n_nodes

    def kernel(*refs):
        # inputs: x, A_wide, pool, W_big, then per-layer ((W_h if i>0), gamma, beta),
        # then outputs z_pad, g_pad, then VMEM scratch hstk.
        x_ref, awide_ref, pool_ref, wbig_ref = refs[:4]
        pos = 4
        layer_refs = []
        for i in range(L):
            n_w = 0 if i == 0 else 1
            layer_refs.append(refs[pos:pos + n_w + 2])
            pos += n_w + 2
        z_ref, g_ref = refs[pos], refs[pos + 1]
        hstk_ref = refs[pos + 2]                      # (R*N, dh) bf16 scratch

        x = x_ref[...]                                # bf16 (N, input_dim)
        a_wide = awide_ref[...]                       # bf16 (N, R*N)

        # One wide projection: layer-0 weights + every layer's zero-padded id-part.
        h_all = jnp.dot(x, wbig_ref[...],
                        preferred_element_type=jnp.float32)      # f32 (N, L*R*dh)

        zs_f32, zs_bf16 = [], []
        z_prev = None
        for i in range(L):
            if i == 0:
                gamma_ref, beta_ref = layer_refs[i]
                h = h_all[:, :R * dh]
            else:
                wh_ref, gamma_ref, beta_ref = layer_refs[i]
                # cat((x[:, :id_dim], z), 1) @ W == (precomputed x_id @ W_id) + z @ W_h
                h = (h_all[:, i * R * dh:(i + 1) * R * dh]
                     + jnp.dot(z_prev, wh_ref[...],
                               preferred_element_type=jnp.float32))
            h_bf = jnp.maximum(h, 0.0).astype(jnp.bfloat16)      # relu + single cast

            # Stage (N, R*dh) -> stacked (R*N, dh) so the per-relation aggregation is a
            # single long-K (K = R*N) MXU matmul instead of R short-K matmuls.
            for r in range(R):
                hstk_ref[r * N:(r + 1) * N, :] = h_bf[:, r * dh:(r + 1) * dh]
            zagg = jnp.dot(a_wide, hstk_ref[...],
                           preferred_element_type=jnp.float32)   # f32 (N, dh)

            # Fused BatchNorm1d (training mode: batch stats, biased variance) + ReLU.
            gamma, beta = gamma_ref[...], beta_ref[...]
            mean = jnp.sum(zagg, axis=0, keepdims=True) * (1.0 / N)
            zc = zagg - mean
            var = jnp.sum(zc * zc, axis=0, keepdims=True) * (1.0 / N)
            z_act = jnp.maximum(zc * jax.lax.rsqrt(var + BN_EPS) * gamma + beta, 0.0)

            zs_f32.append(z_act)
            z_prev = z_act.astype(jnp.bfloat16)
            zs_bf16.append(z_prev)

        # Lane-dense output stores: slabs padded to a multiple of 128 lanes, one store.
        pad = out_pad - L * dh
        if pad > 0:
            zs_f32 = zs_f32 + [jnp.zeros((N, pad), jnp.float32)]
            zs_bf16 = zs_bf16 + [jnp.zeros((N, pad), jnp.bfloat16)]
        z_slab = zs_f32[0] if len(zs_f32) == 1 else jnp.concatenate(zs_f32, axis=1)
        z_ref[...] = z_slab

        # global_add_pool hoisted out of the layer loop: one bf16 x bf16 matmul.
        zb_slab = zs_bf16[0] if len(zs_bf16) == 1 else jnp.concatenate(zs_bf16, axis=1)
        g_ref[...] = jnp.dot(pool_ref[...], zb_slab,
                             preferred_element_type=jnp.float32)

    return kernel


# -------------------------------- parameters --------------------------------
def init_params(key, id_dim, input_dim, hidden_dim, num_layers, num_relations):
    params = []
    for i in range(num_layers):
        din = input_dim if i == 0 else hidden_dim + id_dim
        ws = []
        for _ in range(num_relations):
            key, sub = jax.random.split(key)
            bound = (6.0 / (din + hidden_dim)) ** 0.5          # xavier_uniform_
            ws.append(
                jax.random.uniform(sub, (din, hidden_dim), jnp.float32, -bound, bound))
        w_flat = jnp.concatenate(ws, axis=1)                   # (din, R*dh)
        gamma = jnp.ones((1, hidden_dim), jnp.float32)         # BN default weight
        beta = jnp.zeros((1, hidden_dim), jnp.float32)         # BN default bias
        params.append((w_flat, gamma, beta))
    return params


# ---------------------------------- forward ----------------------------------
def graph_rgsn_forward(params, x, edge_index, edge_type, batch, *, id_dim,
                       num_relations, num_graphs):
    n, input_dim = x.shape
    num_layers = len(params)
    hidden_dim = params[0][1].shape[-1]
    L, R, dh = num_layers, num_relations, hidden_dim
    assert id_dim <= input_dim

    # Densify the edge list into per-relation adjacency: A[r, dst, src] += 1.
    # TODO(synk): PyTorch `z[idx] += v` with duplicate destination indices is
    # last-write-wins (index_put without accumulate); here we implement the intended
    # RGCN scatter-add aggregation, so outputs differ when duplicate edges exist.
    adj = jnp.zeros((R, n, n), jnp.float32)
    adj = adj.at[edge_type, edge_index[0], edge_index[1]].add(1.0)
    # Relation-major wide layout for the long-K aggregation matmul:
    #   A_wide[i, r*n + j] = A[r, i, j].
    # bf16 is exact for edge multiplicities <= 256 and portable to v7x (no int8 MXU).
    a_wide = jnp.transpose(adj, (1, 0, 2)).reshape(n, R * n).astype(jnp.bfloat16)

    # 0/1 pooling matrix for global_add_pool (bf16 is exact for 0/1 entries).
    pool_mat = (batch[None, :] == jnp.arange(num_graphs)[:, None]).astype(jnp.bfloat16)

    # Fold every layer's id-feature weight into one wide input projection:
    #   W_big = [W0_flat | pad(W_id_1) | ... | pad(W_id_{L-1})]  (input_dim, L*R*dh)
    blocks, wh_list = [], []
    for i, (w_flat, _, _) in enumerate(params):
        if i == 0:
            blocks.append(w_flat)                                    # (input_dim, R*dh)
        else:
            wid = w_flat[:id_dim, :]                                 # (id_dim, R*dh)
            pad_rows = jnp.zeros((input_dim - id_dim, w_flat.shape[1]), w_flat.dtype)
            blocks.append(jnp.concatenate([wid, pad_rows], axis=0))  # x @ blk == x_id @ wid
            wh_list.append(w_flat[id_dim:, :])                       # (dh, R*dh)
    w_big = jnp.concatenate(blocks, axis=1).astype(jnp.bfloat16)

    inputs = [x.astype(jnp.bfloat16), a_wide, pool_mat, w_big]
    for i, (_, gamma, beta) in enumerate(params):
        if i > 0:
            inputs.append(wh_list[i - 1].astype(jnp.bfloat16))
        inputs += [gamma, beta]

    out_dim = L * dh
    out_pad = _round_up(out_dim, 128)
    kernel = make_fused_kernel(L, R, dh, n, out_pad)

    z_pad, g_pad = pl.pallas_call(
        kernel,
        out_shape=(jax.ShapeDtypeStruct((n, out_pad), jnp.float32),
                   jax.ShapeDtypeStruct((num_graphs, out_pad), jnp.float32)),
        in_specs=[pl.BlockSpec(memory_space=pltpu.MemorySpace.VMEM) for _ in inputs],
        out_specs=(pl.BlockSpec(memory_space=pltpu.MemorySpace.VMEM),
                   pl.BlockSpec(memory_space=pltpu.MemorySpace.VMEM)),
        scratch_shapes=[pltpu.VMEM((R * n, dh), jnp.bfloat16)],
        # v5e's default scoped VMEM is only 16 MiB of 128 MiB physical; raise it so the
        # whole-graph-resident design keeps working as N grows.
        compiler_params=pltpu.CompilerParams(vmem_limit_bytes=64 * 1024 * 1024),
    )(*inputs)

    # TODO(synk): at large N, split destination-row tiles over a parallel grid axis
    # (v7x has 2 TensorCores) and stream A_wide row tiles via BlockSpec pipelining;
    # that requires a cross-tile reduction for the BatchNorm batch statistics, so it
    # is deliberately not part of this whole-graph-resident version.
    return z_pad[:, :out_dim], g_pad[:, :out_dim]


# ------------------------------------ main ------------------------------------
if __name__ == "__main__":
    id_dim, input_dim, hidden_dim = 8, 16, 32
    num_layers, num_relations = 2, 3
    N, E, G = 24, 64, 4

    key = jax.random.PRNGKey(0)
    k_x, k_ei, k_et, k_b, k_p = jax.random.split(key, 5)

    x = jax.random.normal(k_x, (N, input_dim), jnp.float32)
    edge_index = jax.random.randint(k_ei, (2, E), 0, N, dtype=jnp.int32)
    edge_type = jax.random.randint(k_et, (E,), 0, num_relations, dtype=jnp.int32)
    batch = jnp.sort(jax.random.randint(k_b, (N,), 0, G, dtype=jnp.int32))

    params = init_params(k_p, id_dim, input_dim, hidden_dim, num_layers, num_relations)

    z, g = graph_rgsn_forward(
        params, x, edge_index, edge_type, batch,
        id_dim=id_dim, num_relations=num_relations, num_graphs=G)
    jax.block_until_ready((z, g))

    assert z.shape == (N, hidden_dim * num_layers)
    assert g.shape == (G, hidden_dim * num_layers)
    assert bool(jnp.all(jnp.isfinite(z))) and bool(jnp.all(jnp.isfinite(g)))
    print("KERNEL_OK")
</pallas_src>

<mosaic_0001>
module attributes {stable_mosaic.version = 11 : i64} {
  func.func @kernel(%arg0: memref<24x16xbf16, #tpu.memory_space<vmem>>, %arg1: memref<24x72xbf16, #tpu.memory_space<vmem>>, %arg2: memref<4x24xbf16, #tpu.memory_space<vmem>>, %arg3: memref<16x192xbf16, #tpu.memory_space<vmem>>, %arg4: memref<1x32xf32, #tpu.memory_space<vmem>>, %arg5: memref<1x32xf32, #tpu.memory_space<vmem>>, %arg6: memref<32x96xbf16, #tpu.memory_space<vmem>>, %arg7: memref<1x32xf32, #tpu.memory_space<vmem>>, %arg8: memref<1x32xf32, #tpu.memory_space<vmem>>, %arg9: memref<24x128xf32, #tpu.memory_space<vmem>>, %arg10: memref<4x128xf32, #tpu.memory_space<vmem>>, %arg11: memref<72x32xbf16, #tpu.memory_space<vmem>>) attributes {dimension_semantics = [], scalar_prefetch = 0 : i64, scratch_operands = 1 : i64, tpu.core_type = #tpu.core_type<tc>} {
    %c0 = arith.constant 0 : index
    %c0_0 = arith.constant 0 : index
    %0 = vector.load %arg0[%c0, %c0_0] : memref<24x16xbf16, #tpu.memory_space<vmem>>, vector<24x16xbf16>
    %c0_1 = arith.constant 0 : index
    %c0_2 = arith.constant 0 : index
    %1 = vector.load %arg1[%c0_1, %c0_2] : memref<24x72xbf16, #tpu.memory_space<vmem>>, vector<24x72xbf16>
    %c0_3 = arith.constant 0 : index
    %c0_4 = arith.constant 0 : index
    %2 = vector.load %arg3[%c0_3, %c0_4] : memref<16x192xbf16, #tpu.memory_space<vmem>>, vector<16x192xbf16>
    %cst = arith.constant dense<0.000000e+00> : vector<24x192xf32>
    %3 = tpu.matmul %0, %2, %cst {dimension_numbers = #tpu.dot_dimension_numbers<[1], [0], [0], [1], [0, 0, 1, 1], [], []>} : vector<24x16xbf16>, vector<16x192xbf16>, vector<24x192xf32> -> vector<24x192xf32>
    %4 = vector.extract_strided_slice %3 {offsets = [0, 0], sizes = [24, 96], strides = [1, 1]} : vector<24x192xf32> to vector<24x96xf32>
    %cst_5 = arith.constant 0.000000e+00 : f32
    %5 = vector.broadcast %cst_5 : f32 to vector<24x96xf32>
    %6 = arith.maximumf %4, %5 : vector<24x96xf32>
    %7 = arith.truncf %6 : vector<24x96xf32> to vector<24x96xbf16>
    %8 = vector.extract_strided_slice %7 {offsets = [0, 0], sizes = [24, 32], strides = [1, 1]} : vector<24x96xbf16> to vector<24x32xbf16>
    %c0_6 = arith.constant 0 : index
    %c0_7 = arith.constant 0 : index
    %9 = vector.load %arg11[%c0_6, %c0_7] : memref<72x32xbf16, #tpu.memory_space<vmem>>, vector<24x32xbf16>
    tpu.vector_store %arg11[%c0_6, %c0_7], %8 {strides = array<i32>} : memref<72x32xbf16, #tpu.memory_space<vmem>>, vector<24x32xbf16>,
    %10 = vector.extract_strided_slice %7 {offsets = [0, 32], sizes = [24, 32], strides = [1, 1]} : vector<24x96xbf16> to vector<24x32xbf16>
    %c24 = arith.constant 24 : index
    %c0_8 = arith.constant 0 : index
    %11 = vector.load %arg11[%c24, %c0_8] : memref<72x32xbf16, #tpu.memory_space<vmem>>, vector<24x32xbf16>
    tpu.vector_store %arg11[%c24, %c0_8], %10 {strides = array<i32>} : memref<72x32xbf16, #tpu.memory_space<vmem>>, vector<24x32xbf16>,
    %12 = vector.extract_strided_slice %7 {offsets = [0, 64], sizes = [24, 32], strides = [1, 1]} : vector<24x96xbf16> to vector<24x32xbf16>
    %c48 = arith.constant 48 : index
    %c0_9 = arith.constant 0 : index
    %13 = vector.load %arg11[%c48, %c0_9] : memref<72x32xbf16, #tpu.memory_space<vmem>>, vector<24x32xbf16>
    tpu.vector_store %arg11[%c48, %c0_9], %12 {strides = array<i32>} : memref<72x32xbf16, #tpu.memory_space<vmem>>, vector<24x32xbf16>,
    %c0_10 = arith.constant 0 : index
    %c0_11 = arith.constant 0 : index
    %14 = vector.load %arg11[%c0_10, %c0_11] : memref<72x32xbf16, #tpu.memory_space<vmem>>, vector<72x32xbf16>
    %cst_12 = arith.constant dense<0.000000e+00> : vector<24x32xf32>
    %15 = tpu.matmul %1, %14, %cst_12 {dimension_numbers = #tpu.dot_dimension_numbers<[1], [0], [0], [1], [0, 0, 1, 1], [], []>} : vector<24x72xbf16>, vector<72x32xbf16>, vector<24x32xf32> -> vector<24x32xf32>
    %c0_13 = arith.constant 0 : index
    %c0_14 = arith.constant 0 : index
    %16 = vector.load %arg4[%c0_13, %c0_14] : memref<1x32xf32, #tpu.memory_space<vmem>>, vector<1x32xf32>
    %c0_15 = arith.constant 0 : index
    %c0_16 = arith.constant 0 : index
    %17 = vector.load %arg5[%c0_15, %c0_16] : memref<1x32xf32, #tpu.memory_space<vmem>>, vector<1x32xf32>
    %cst_17 = arith.constant dense<0.000000e+00> : vector<32xf32>
    %18 = vector.multi_reduction <add>, %15, %cst_17 [0] : vector<24x32xf32> to vector<32xf32>
    %19 = vector.shape_cast %18 : vector<32xf32> to vector<1x32xf32>
    %cst_18 = arith.constant 0.0416666679 : f32
    %20 = vector.broadcast %cst_18 : f32 to vector<1x32xf32>
    %21 = arith.mulf %19, %20 : vector<1x32xf32>
    %22 = vector.broadcast %21 : vector<1x32xf32> to vector<24x32xf32>
    %23 = arith.subf %15, %22 : vector<24x32xf32>
    %24 = arith.mulf %23, %23 : vector<24x32xf32>
    %cst_19 = arith.constant dense<0.000000e+00> : vector<32xf32>
    %25 = vector.multi_reduction <add>, %24, %cst_19 [0] : vector<24x32xf32> to vector<32xf32>
    %26 = vector.shape_cast %25 : vector<32xf32> to vector<1x32xf32>
    %cst_20 = arith.constant 0.0416666679 : f32
    %27 = vector.broadcast %cst_20 : f32 to vector<1x32xf32>
    %28 = arith.mulf %26, %27 : vector<1x32xf32>
    %cst_21 = arith.constant 9.99999974E-6 : f32
    %29 = vector.broadcast %cst_21 : f32 to vector<1x32xf32>
    %30 = arith.addf %28, %29 : vector<1x32xf32>
    %31 = math.rsqrt %30 : vector<1x32xf32>
    %32 = vector.broadcast %31 : vector<1x32xf32> to vector<24x32xf32>
    %33 = arith.mulf %23, %32 : vector<24x32xf32>
    %34 = vector.broadcast %16 : vector<1x32xf32> to vector<24x32xf32>
    %35 = arith.mulf %33, %34 : vector<24x32xf32>
    %36 = vector.broadcast %17 : vector<1x32xf32> to vector<24x32xf32>
    %37 = arith.addf %35, %36 : vector<24x32xf32>
    %cst_22 = arith.constant 0.000000e+00 : f32
    %38 = vector.broadcast %cst_22 : f32 to vector<24x32xf32>
    %39 = arith.maximumf %37, %38 : vector<24x32xf32>
    %40 = arith.truncf %39 : vector<24x32xf32> to vector<24x32xbf16>
    %41 = vector.extract_strided_slice %3 {offsets = [0, 96], sizes = [24, 96], strides = [1, 1]} : vector<24x192xf32> to vector<24x96xf32>
    %c0_23 = arith.constant 0 : index
    %c0_24 = arith.constant 0 : index
    %42 = vector.load %arg6[%c0_23, %c0_24] : memref<32x96xbf16, #tpu.memory_space<vmem>>, vector<32x96xbf16>
    %cst_25 = arith.constant dense<0.000000e+00> : vector<24x96xf32>
    %43 = tpu.matmul %40, %42, %cst_25 {dimension_numbers = #tpu.dot_dimension_numbers<[1], [0], [0], [1], [0, 0, 1, 1], [], []>} : vector<24x32xbf16>, vector<32x96xbf16>, vector<24x96xf32> -> vector<24x96xf32>
    %44 = arith.addf %41, %43 : vector<24x96xf32>
    %cst_26 = arith.constant 0.000000e+00 : f32
    %45 = vector.broadcast %cst_26 : f32 to vector<24x96xf32>
    %46 = arith.maximumf %44, %45 : vector<24x96xf32>
    %47 = arith.truncf %46 : vector<24x96xf32> to vector<24x96xbf16>
    %48 = vector.extract_strided_slice %47 {offsets = [0, 0], sizes = [24, 32], strides = [1, 1]} : vector<24x96xbf16> to vector<24x32xbf16>
    %c0_27 = arith.constant 0 : index
    %c0_28 = arith.constant 0 : index
    %49 = vector.load %arg11[%c0_27, %c0_28] : memref<72x32xbf16, #tpu.memory_space<vmem>>, vector<24x32xbf16>
    tpu.vector_store %arg11[%c0_27, %c0_28], %48 {strides = array<i32>} : memref<72x32xbf16, #tpu.memory_space<vmem>>, vector<24x32xbf16>,
    %50 = vector.extract_strided_slice %47 {offsets = [0, 32], sizes = [24, 32], strides = [1, 1]} : vector<24x96xbf16> to vector<24x32xbf16>
    %c24_29 = arith.constant 24 : index
    %c0_30 = arith.constant 0 : index
    %51 = vector.load %arg11[%c24_29, %c0_30] : memref<72x32xbf16, #tpu.memory_space<vmem>>, vector<24x32xbf16>
    tpu.vector_store %arg11[%c24_29, %c0_30], %50 {strides = array<i32>} : memref<72x32xbf16, #tpu.memory_space<vmem>>, vector<24x32xbf16>,
    %52 = vector.extract_strided_slice %47 {offsets = [0, 64], sizes = [24, 32], strides = [1, 1]} : vector<24x96xbf16> to vector<24x32xbf16>
    %c48_31 = arith.constant 48 : index
    %c0_32 = arith.constant 0 : index
    %53 = vector.load %arg11[%c48_31, %c0_32] : memref<72x32xbf16, #tpu.memory_space<vmem>>, vector<24x32xbf16>
    tpu.vector_store %arg11[%c48_31, %c0_32], %52 {strides = array<i32>} : memref<72x32xbf16, #tpu.memory_space<vmem>>, vector<24x32xbf16>,
    %c0_33 = arith.constant 0 : index
    %c0_34 = arith.constant 0 : index
    %54 = vector.load %arg11[%c0_33, %c0_34] : memref<72x32xbf16, #tpu.memory_space<vmem>>, vector<72x32xbf16>
    %cst_35 = arith.constant dense<0.000000e+00> : vector<24x32xf32>
    %55 = tpu.matmul %1, %54, %cst_35 {dimension_numbers = #tpu.dot_dimension_numbers<[1], [0], [0], [1], [0, 0, 1, 1], [], []>} : vector<24x72xbf16>, vector<72x32xbf16>, vector<24x32xf32> -> vector<24x32xf32>
    %c0_36 = arith.constant 0 : index
    %c0_37 = arith.constant 0 : index
    %56 = vector.load %arg7[%c0_36, %c0_37] : memref<1x32xf32, #tpu.memory_space<vmem>>, vector<1x32xf32>
    %c0_38 = arith.constant 0 : index
    %c0_39 = arith.constant 0 : index
    %57 = vector.load %arg8[%c0_38, %c0_39] : memref<1x32xf32, #tpu.memory_space<vmem>>, vector<1x32xf32>
    %cst_40 = arith.constant dense<0.000000e+00> : vector<32xf32>
    %58 = vector.multi_reduction <add>, %55, %cst_40 [0] : vector<24x32xf32> to vector<32xf32>
    %59 = vector.shape_cast %58 : vector<32xf32> to vector<1x32xf32>
    %cst_41 = arith.constant 0.0416666679 : f32
    %60 = vector.broadcast %cst_41 : f32 to vector<1x32xf32>
    %61 = arith.mulf %59, %60 : vector<1x32xf32>
    %62 = vector.broadcast %61 : vector<1x32xf32> to vector<24x32xf32>
    %63 = arith.subf %55, %62 : vector<24x32xf32>
    %64 = arith.mulf %63, %63 : vector<24x32xf32>
    %cst_42 = arith.constant dense<0.000000e+00> : vector<32xf32>
    %65 = vector.multi_reduction <add>, %64, %cst_42 [0] : vector<24x32xf32> to vector<32xf32>
    %66 = vector.shape_cast %65 : vector<32xf32> to vector<1x32xf32>
    %cst_43 = arith.constant 0.0416666679 : f32
    %67 = vector.broadcast %cst_43 : f32 to vector<1x32xf32>
    %68 = arith.mulf %66, %67 : vector<1x32xf32>
    %cst_44 = arith.constant 9.99999974E-6 : f32
    %69 = vector.broadcast %cst_44 : f32 to vector<1x32xf32>
    %70 = arith.addf %68, %69 : vector<1x32xf32>
    %71 = math.rsqrt %70 : vector<1x32xf32>
    %72 = vector.broadcast %71 : vector<1x32xf32> to vector<24x32xf32>
    %73 = arith.mulf %63, %72 : vector<24x32xf32>
    %74 = vector.broadcast %56 : vector<1x32xf32> to vector<24x32xf32>
    %75 = arith.mulf %73, %74 : vector<24x32xf32>
    %76 = vector.broadcast %57 : vector<1x32xf32> to vector<24x32xf32>
    %77 = arith.addf %75, %76 : vector<24x32xf32>
    %cst_45 = arith.constant 0.000000e+00 : f32
    %78 = vector.broadcast %cst_45 : f32 to vector<24x32xf32>
    %79 = arith.maximumf %77, %78 : vector<24x32xf32>
    %80 = arith.truncf %79 : vector<24x32xf32> to vector<24x32xbf16>
    %cst_46 = arith.constant 0.000000e+00 : f32
    %81 = vector.broadcast %cst_46 : f32 to vector<24x64xf32>
    %cst_47 = arith.constant 0.000000e+00 : bf16
    %82 = vector.broadcast %cst_47 : bf16 to vector<24x64xbf16>
    %83 = tpu.concatenate %39, %79, %81 in 1 : vector<24x32xf32>, vector<24x32xf32>, vector<24x64xf32> -> vector<24x128xf32>
    %c0_48 = arith.constant 0 : index
    %c0_49 = arith.constant 0 : index
    %84 = vector.load %arg9[%c0_48, %c0_49] : memref<24x128xf32, #tpu.memory_space<vmem>>, vector<24x128xf32>
    tpu.vector_store %arg9[%c0_48, %c0_49], %83 {strides = array<i32>} : memref<24x128xf32, #tpu.memory_space<vmem>>, vector<24x128xf32>,
    %85 = tpu.concatenate %40, %80, %82 in 1 : vector<24x32xbf16>, vector<24x32xbf16>, vector<24x64xbf16> -> vector<24x128xbf16>
    %c0_50 = arith.constant 0 : index
    %c0_51 = arith.constant 0 : index
    %86 = vector.load %arg2[%c0_50, %c0_51] : memref<4x24xbf16, #tpu.memory_space<vmem>>, vector<4x24xbf16>
    %cst_52 = arith.constant dense<0.000000e+00> : vector<4x128xf32>
    %87 = tpu.matmul %86, %85, %cst_52 {dimension_numbers = #tpu.dot_dimension_numbers<[1], [0], [0], [1], [0, 0, 1, 1], [], []>} : vector<4x24xbf16>, vector<24x128xbf16>, vector<4x128xf32> -> vector<4x128xf32>
    %c0_53 = arith.constant 0 : index
    %c0_54 = arith.constant 0 : index
    %88 = vector.load %arg10[%c0_53, %c0_54] : memref<4x128xf32, #tpu.memory_space<vmem>>, vector<4x128xf32>
    tpu.vector_store %arg10[%c0_53, %c0_54], %87 {strides = array<i32>} : memref<4x128xf32, #tpu.memory_space<vmem>>, vector<4x128xf32>,
    return
  }
}

</mosaic_0001>

<llo_original>
// kernel: tpu_custom_call.1
$region0: #{tpu_custom_call.1}
  #allocation0 [shape = 'u32[]', space=smem, size = 0x4, offset = 0x4, fixed_abs, tag = 'smem constant byte address 0x4 - core index']
  #allocation1 [shape = 'u32[72,128]{1,0:T(1,128)}', space=vmem, size = 0x9000, scoped, tag = 'internal scratch']
  #allocation2 [shape = 'bf16[72,32]{1,0:T(8,128)(2,1)}', space=vmem, size = 0x4800, scoped, tag = 'scratch operand']
  %s0 = inlined_call_operand.vmem [shape: bf16[24,16], index: 0, kind: input, shape index: {}]
  %s1 = inlined_call_operand.hbm [shape: bf16[24,72], index: 1, kind: input, shape index: {}]
  %s2 = inlined_call_operand.vmem [shape: bf16[4,24], index: 2, kind: input, shape index: {}]
  %s3 = inlined_call_operand.vmem [shape: bf16[16,192], index: 3, kind: input, shape index: {}]
  %s4 = inlined_call_operand.vmem [shape: f32[1,32], index: 4, kind: input, shape index: {}]
  %s5 = inlined_call_operand.vmem [shape: f32[1,32], index: 5, kind: input, shape index: {}]
  %s6 = inlined_call_operand.hbm [shape: bf16[32,96], index: 6, kind: input, shape index: {}]
  %s7 = inlined_call_operand.vmem [shape: f32[1,32], index: 7, kind: input, shape index: {}]
  %s8 = inlined_call_operand.vmem [shape: f32[1,32], index: 8, kind: input, shape index: {}]
  %s9 = inlined_call_operand.hbm [shape: f32[24,128], index: 9, kind: output, shape index: {0}]
  %s10 = inlined_call_operand.hbm [shape: f32[4,128], index: 10, kind: output, shape index: {1}]
  %11 = xla_tuple %s9, %s10
  %s12 = sld [smem:[#allocation0]]
  $region62: #{tpu_custom_call.1} parent=0
    _
  %s14 = ssub.s32 1, %s12
  %s15 = scalar_select 0, %s14, %s12
  $region1: #{tpu_custom_call.1} parent=0
    #allocation3 [shape = 'u8[6144]{0}', space=vmem, size = 0x1800, scoped, tag = 'input window, operand 1, single buffered']
    #allocation4 [shape = 's32[1]{0}', space=sflag, size = 0x4, scoped, tag = 'scoped memory for tpu_custom_call.1']
    #allocation5 [shape = 's32[1]{0}', space=sflag, size = 0x4, scoped, tag = 'scoped memory for tpu_custom_call.1']
    #allocation6 [shape = 'u8[8192]{0}', space=vmem, size = 0x2000, scoped, tag = 'input window, operand 6, single buffered']
    #allocation7 [shape = 's32[1]{0}', space=sflag, size = 0x4, scoped, tag = 'scoped memory for tpu_custom_call.1']
    #allocation8 [shape = 'u8[12288]{0}', space=vmem, size = 0x3000, scoped, tag = 'output window, operand 0, single buffered']
    #allocation9 [shape = 'u8[2048]{0}', space=vmem, size = 0x800, scoped, tag = 'output window, operand 1, single buffered']
    #allocation10 [shape = 's32[1]{0}', space=sflag, size = 0x4, scoped, tag = 'scoped memory for tpu_custom_call.1']
    %16 = vsyncpa [#allocation4], 0
    %17 = vsyncpa [#allocation7], 0
    %18 = vsyncpa [#allocation5], 0
    %19 = vsyncpa [#allocation10], 0
    // Predicated region
    $region2: #{tpu_custom_call.1} parent=1 // pred_check
      _
    $region3: #{tpu_custom_call.1} parent=1 // pred_check_branch
      %21 = sbr.rel (0) target = $region5
    $region4: #{tpu_custom_call.1} parent=1 // pred_region
      _
    $region5: #{tpu_custom_call.1} parent=1 // pred_fallthru
      _
    // Predicated region
    $region6: #{tpu_custom_call.1} parent=1 // pred_check
      _
    $region7: #{tpu_custom_call.1} parent=1 // pred_check_branch
      %23 = sbr.rel (0) target = $region9
    $region8: #{tpu_custom_call.1} parent=1 // pred_region
      %25 = vsyncadd [#allocation4], 0
      %s26 = sshll.u32 %s1, 4
      %s27 = int_to_ptr.hbm [resolvable:$true] %s26
      %s28 = sshll.u32 [#allocation3], 4
      %s29 = int_to_ptr.vmem [resolvable:$true] %s28
      %34 = dma.hbm_to_vmem [thread:$0]  %s27, 192, %s29, [#allocation4], 64, 64, 4
    $region9: #{tpu_custom_call.1} parent=1 // pred_fallthru
      _
    // Predicated region
    $region10: #{tpu_custom_call.1} parent=1 // pred_check
      _
    $region11: #{tpu_custom_call.1} parent=1 // pred_check_branch
      %36 = sbr.rel (0) target = $region13
    $region12: #{tpu_custom_call.1} parent=1 // pred_region
      _
    $region13: #{tpu_custom_call.1} parent=1 // pred_fallthru
      _
    // Predicated region
    $region14: #{tpu_custom_call.1} parent=1 // pred_check
      _
    $region15: #{tpu_custom_call.1} parent=1 // pred_check_branch
      %38 = sbr.rel (0) target = $region17
    $region16: #{tpu_custom_call.1} parent=1 // pred_region
      _
    $region17: #{tpu_custom_call.1} parent=1 // pred_fallthru
      _
    // Predicated region
    $region18: #{tpu_custom_call.1} parent=1 // pred_check
      _
    $region19: #{tpu_custom_call.1} parent=1 // pred_check_branch
      %40 = sbr.rel (0) target = $region21
    $region20: #{tpu_custom_call.1} parent=1 // pred_region
      _
    $region21: #{tpu_custom_call.1} parent=1 // pred_fallthru
      _
    // Predicated region
    $region22: #{tpu_custom_call.1} parent=1 // pred_check
      _
    $region23: #{tpu_custom_call.1} parent=1 // pred_check_branch
      %42 = sbr.rel (0) target = $region25
    $region24: #{tpu_custom_call.1} parent=1 // pred_region
      _
    $region25: #{tpu_custom_call.1} parent=1 // pred_fallthru
      _
    // Predicated region
    $region26: #{tpu_custom_call.1} parent=1 // pred_check
      _
    $region27: #{tpu_custom_call.1} parent=1 // pred_check_branch
      %44 = sbr.rel (0) target = $region29
    $region28: #{tpu_custom_call.1} parent=1 // pred_region
      %46 = vsyncadd [#allocation7], 0
      %s47 = sshll.u32 %s6, 4
      %s48 = int_to_ptr.hbm [resolvable:$true] %s47
      %s49 = sshll.u32 [#allocation6], 4
      %s50 = int_to_ptr.vmem [resolvable:$true] %s49
      %55 = dma.hbm_to_vmem [thread:$0]  %s48, 256, %s50, [#allocation7], 64, 64, 4
    $region29: #{tpu_custom_call.1} parent=1 // pred_fallthru
      _
    // Predicated region
    $region30: #{tpu_custom_call.1} parent=1 // pred_check
      _
    $region31: #{tpu_custom_call.1} parent=1 // pred_check_branch
      %57 = sbr.rel (0) target = $region33
    $region32: #{tpu_custom_call.1} parent=1 // pred_region
      _
    $region33: #{tpu_custom_call.1} parent=1 // pred_fallthru
      _
    // Predicated region
    $region34: #{tpu_custom_call.1} parent=1 // pred_check
      _
    $region35: #{tpu_custom_call.1} parent=1 // pred_check_branch
      %59 = sbr.rel (0) target = $region37
    $region36: #{tpu_custom_call.1} parent=1 // pred_region
      _
    $region37: #{tpu_custom_call.1} parent=1 // pred_fallthru
      _
    // Predicated region
    $region38: #{tpu_custom_call.1} parent=1 // pred_check
      _
    $region39: #{tpu_custom_call.1} parent=1 // pred_check_branch
      %61 = sbr.rel (0) target = $region41
    $region40: #{tpu_custom_call.1} parent=1 // pred_region
      %63 = dma.done [#allocation4], 192
    $region41: #{tpu_custom_call.1} parent=1 // pred_fallthru
      _
    // Predicated region
    $region42: #{tpu_custom_call.1} parent=1 // pred_check
      _
    $region43: #{tpu_custom_call.1} parent=1 // pred_check_branch
      %65 = sbr.rel (0) target = $region45
    $region44: #{tpu_custom_call.1} parent=1 // pred_region
      %67 = dma.done [#allocation7], 256
    $region45: #{tpu_custom_call.1} parent=1 // pred_fallthru
      _
    %v69 = vld [vmem:[%s0] sm:$0xf]
    %v70 = vld [vmem:[%s0 + $0x4] sm:$0xf]
    %v71 = vld [vmem:[%s0 + $0x8] sm:$0xf]
    %v72 = vld [vmem:[#allocation3] sm:$0xf]
    %v73 = vld [vmem:[#allocation3 + $0x4] sm:$0xf]
    %v74 = vld [vmem:[#allocation3 + $0x8] sm:$0xf]
    %v75 = vld [vmem:[%s3] sm:$0xff]
    %v76 = vld [vmem:[%s3 + $0x8] sm:$0xff]
    %v80 = vunpack.c.l.b16 %v69
    %v81 = vunpack.c.l.b16 %v70
    %v82 = vunpack.c.l.b16 %v71
    %v83 = vpack.c.b16 %v81, %v80
    %v84 = vpack.c.b16 %v82, %v82
    %v87 = vunpack.c.l.b16 %v75
    %v88 = vunpack.c.h.b16 %v75
    %v89 = vunpack.c.l.b16 %v76
    %v90 = vunpack.c.h.b16 %v76
    %v91 = vpack.c.b16 %v89, %v87
    %v92 = vpack.c.b16 %v90, %v88
    %vm95 = vcmask 130048
    %v97 = vsel %vm95, %v83, 0
    %v100 = vsel %vm95, %v84, 0
    %102 = vmatpush.bf16.msra.mxu0 0
    %103 = vmatpush.bf16.msra.mxu0 0
    %104 = vmatpush.bf16.msra.mxu0 0
    %105 = vmatpush.bf16.msra.mxu0 0
    %106 = vmatpush.bf16.msra.mxu0 0
    %107 = vmatpush.bf16.msra.mxu0 0
    %108 = vmatpush.bf16.msra.mxu0 0
    %109 = vmatpush.bf16.msra.mxu0 %v91
    %110 = vmatmul.bf16.gmra.mxu0 %v97
    %v111 = vpop.f32.mrf.mxu0
    %v112 = vadd.f32 0.0, %v111
    %v113 = vpop.f32.mrf.mxu0
    %v114 = vadd.f32 0.0, %v113
    %115 = vmatmul.bf16.gmra.mxu0 %v100
    %v116 = vpop.f32.mrf.mxu0
    %v117 = vadd.f32 0.0, %v116
    %v118 = vpop.f32.mrf.mxu0
    %119 = vdwg.mxu0
    %120 = vmatpush.bf16.msra.mxu0 0
    %121 = vmatpush.bf16.msra.mxu0 0
    %122 = vmatpush.bf16.msra.mxu0 0
    %123 = vmatpush.bf16.msra.mxu0 0
    %124 = vmatpush.bf16.msra.mxu0 0
    %125 = vmatpush.bf16.msra.mxu0 0
    %126 = vmatpush.bf16.msra.mxu0 0
    %127 = vmatpush.bf16.msra.mxu0 %v92
    %128 = vmatmul.bf16.gmra.mxu0 %v97
    %v129 = vpop.f32.mrf.mxu0
    %v130 = vadd.f32 0.0, %v129
    %v131 = vpop.f32.mrf.mxu0
    %v132 = vadd.f32 0.0, %v131
    %133 = vmatmul.bf16.gmra.mxu0 %v100
    %v134 = vpop.f32.mrf.mxu0
    %v135 = vadd.f32 0.0, %v134
    %v136 = vpop.f32.mrf.mxu0
    %137 = vdwg.mxu0
    %v138 = vmax.f32 %v112, 0.0
    %v139 = vmax.f32 %v114, 0.0
    %v140 = vmax.f32 %v117, 0.0
    %v141 = vpack.c.bf16 %v138, %v138
    %v142 = vpack.c.bf16 %v139, %v139
    %v143 = vpack.c.bf16 %v140, %v140
    %vm144 = vcmask 257024
    %145 = vst.msk [vmem:[#allocation2] sm:$0xf] %vm144, %v141
    %146 = vst.msk [vmem:[#allocation2 + $0x4] sm:$0xf] %vm144, %v142
    %147 = vst.msk [vmem:[#allocation2 + $0x8] sm:$0xf] %vm144, %v143
    %151 = vrot.lane.b32.xlu0 %v141, 96
    %v152 = vpop.permute.xlu0 %151
    %153 = vrot.lane.b32.xlu0 %v142, 96
    %v154 = vpop.permute.xlu0 %153
    %155 = vrot.lane.b32.xlu0 %v143, 96
    %v156 = vpop.permute.xlu0 %155
    %160 = vst.msk [vmem:[#allocation2 + $0xc] sm:$0xf] %vm144, %v152
    %161 = vst.msk [vmem:[#allocation2 + $0x10] sm:$0xf] %vm144, %v154
    %162 = vst.msk [vmem:[#allocation2 + $0x14] sm:$0xf] %vm144, %v156
    %163 = vrot.lane.b32.xlu0 %v141, 64
    %v164 = vpop.permute.xlu0 %163
    %165 = vrot.lane.b32.xlu0 %v142, 64
    %v166 = vpop.permute.xlu0 %165
    %167 = vrot.lane.b32.xlu0 %v143, 64
    %v168 = vpop.permute.xlu0 %167
    %172 = vst.msk [vmem:[#allocation2 + $0x18] sm:$0xf] %vm144, %v164
    %173 = vst.msk [vmem:[#allocation2 + $0x1c] sm:$0xf] %vm144, %v166
    %174 = vst.msk [vmem:[#allocation2 + $0x20] sm:$0xf] %vm144, %v168
    %v175 = vld [vmem:[#allocation2] sm:$0xf]
    %v176 = vld [vmem:[#allocation2 + $0x4] sm:$0xf]
    %v177 = vld [vmem:[#allocation2 + $0x8] sm:$0xf]
    %v178 = vld [vmem:[#allocation2 + $0xc] sm:$0xf]
    %v179 = vld [vmem:[#allocation2 + $0x10] sm:$0xf]
    %v180 = vld [vmem:[#allocation2 + $0x14] sm:$0xf]
    %v181 = vld [vmem:[#allocation2 + $0x18] sm:$0xf]
    %v182 = vld [vmem:[#allocation2 + $0x1c] sm:$0xf]
    %v183 = vld [vmem:[#allocation2 + $0x20] sm:$0xf]
    %v187 = vunpack.c.l.b16 %v72
    %v188 = vunpack.c.l.b16 %v73
    %v189 = vunpack.c.l.b16 %v74
    %v190 = vpack.c.b16 %v188, %v187
    %v191 = vpack.c.b16 %v189, %v189
    %v201 = vunpack.c.l.b16 %v175
    %v202 = vunpack.c.l.b16 %v176
    %v203 = vunpack.c.l.b16 %v177
    %v204 = vunpack.c.l.b16 %v178
    %v205 = vunpack.c.l.b16 %v179
    %v206 = vunpack.c.l.b16 %v180
    %v207 = vunpack.c.l.b16 %v181
    %v208 = vunpack.c.l.b16 %v182
    %v209 = vunpack.c.l.b16 %v183
    %v210 = vpack.c.b16 %v202, %v201
    %v211 = vpack.c.b16 %v204, %v203
    %v212 = vpack.c.b16 %v206, %v205
    %v213 = vpack.c.b16 %v208, %v207
    %v214 = vpack.c.b16 %v209, %v209
    %vm219 = vcmask 588800
    %v221 = vsel %vm219, %v190, 0
    %v224 = vsel %vm219, %v191, 0
    %vm226 = vcmask 1043456
    %v228 = vsel %vm226, %v214, 0
    %230 = vmatpush.bf16.msra.mxu0 0
    %231 = vmatpush.bf16.msra.mxu0 0
    %232 = vmatpush.bf16.msra.mxu0 0
    %233 = vmatpush.bf16.msra.mxu0 %v228
    %234 = vmatpush.bf16.msra.mxu0 %v213
    %235 = vmatpush.bf16.msra.mxu0 %v212
    %236 = vmatpush.bf16.msra.mxu0 %v211
    %237 = vmatpush.bf16.msra.mxu0 %v210
    %238 = vmatmul.bf16.gmra.mxu0 %v221
    %v239 = vpop.f32.mrf.mxu0
    %v240 = vadd.f32 0.0, %v239
    %v241 = vpop.f32.mrf.mxu0
    %v242 = vadd.f32 0.0, %v241
    %243 = vmatmul.bf16.gmra.mxu0 %v224
    %v244 = vpop.f32.mrf.mxu0
    %v245 = vadd.f32 0.0, %v244
    %v246 = vpop.f32.mrf.mxu0
    %247 = vdwg.mxu0
    %v248 = vld [vmem:[%s4] sm:$0x1]
    %v249 = vld [vmem:[%s5] sm:$0x1]
    %vm250 = vcmask 261120
    %v251 = vsel %vm250, %v240, 0.0
    %v252 = vsel %vm250, %v242, 0.0
    %v253 = vadd.f32 %v251, %v252
    %v254 = vsel %vm250, %v245, 0.0
    %v255 = vadd.f32 %v253, %v254
    %v256 = vrot.slane %v255, 4
    %v257 = vadd.f32 %v255, %v256
    %v258 = vrot.slane %v257, 2
    %v259 = vadd.f32 %v257, %v258
    %v260 = vrot.slane %v259, 1
    %v261 = vadd.f32 %v259, %v260
    %v262 = vmul.f32 %v261, 0.041666668
    %v263 = vsub.f32 %v240, %v262
    %v264 = vsub.f32 %v242, %v262
    %v265 = vsub.f32 %v245, %v262
    %v266 = vmul.f32 %v263, %v263
    %v267 = vmul.f32 %v264, %v264
    %v268 = vmul.f32 %v265, %v265
    %v269 = vsel %vm250, %v266, 0.0
    %v270 = vsel %vm250, %v267, 0.0
    %v271 = vadd.f32 %v269, %v270
    %v272 = vsel %vm250, %v268, 0.0
    %v273 = vadd.f32 %v271, %v272
    %v274 = vrot.slane %v273, 4
    %v275 = vadd.f32 %v273, %v274
    %v276 = vrot.slane %v275, 2
    %v277 = vadd.f32 %v275, %v276
    %v278 = vrot.slane %v277, 1
    %v279 = vadd.f32 %v277, %v278
    %v280 = vmul.f32 %v279, 0.041666668
    %v281 = vadd.f32 %v280, 1e-05
    %v282 = vrsqrt.pop %v281
    %v283 = vmul.f32 %v282, %v281
    %v284 = vmul.f32 %v283, %v282
    %v285 = vmul.f32 0.5, %v284
    %v286 = vsub.f32 1.5, %v285
    %v287 = vmul.f32 %v282, %v286
    %vm288 = vweird.f32 %v281
    %vm289 = vweird.f32 %v282
    %vm290 = vmor %vm288, %vm289
    %v291 = vsel %vm290, %v282, %v287
    %v292 = vmul.f32 %v263, %v291
    %v293 = vmul.f32 %v264, %v291
    %v294 = vmul.f32 %v265, %v291
    %v296 = vperm.slane %v248, 0
    %v298 = vmul.f32 %v292, %v296
    %v299 = vmul.f32 %v293, %v296
    %v300 = vmul.f32 %v294, %v296
    %v302 = vperm.slane %v249, 0
    %v304 = vadd.f32 %v298, %v302
    %v305 = vadd.f32 %v299, %v302
    %v306 = vadd.f32 %v300, %v302
    %v307 = vmax.f32 %v304, 0.0
    %v308 = vmax.f32 %v305, 0.0
    %v309 = vmax.f32 %v306, 0.0
    %v310 = vpack.c.bf16 %v307, %v307
    %v311 = vpack.c.bf16 %v308, %v308
    %v312 = vpack.c.bf16 %v309, %v309
    %v313 = vld [vmem:[#allocation6] sm:$0xf]
    %v314 = vld [vmem:[#allocation6 + $0x4] sm:$0xf]
    %v315 = vld [vmem:[#allocation6 + $0x8] sm:$0xf]
    %v316 = vld [vmem:[#allocation6 + $0xc] sm:$0xf]
    %v320 = vunpack.c.l.b16 %v310
    %v321 = vunpack.c.l.b16 %v311
    %v322 = vunpack.c.l.b16 %v312
    %v323 = vpack.c.b16 %v321, %v320
    %v324 = vpack.c.b16 %v322, %v322
    %v329 = vunpack.c.l.b16 %v313
    %v330 = vunpack.c.l.b16 %v314
    %v331 = vunpack.c.l.b16 %v315
    %v332 = vunpack.c.l.b16 %v316
    %v333 = vpack.c.b16 %v330, %v329
    %v334 = vpack.c.b16 %v332, %v331
    %v338 = vsel %vm250, %v323, 0
    %v341 = vsel %vm250, %v324, 0
    %343 = vmatpush.bf16.msra.mxu0 0
    %344 = vmatpush.bf16.msra.mxu0 0
    %345 = vmatpush.bf16.msra.mxu0 0
    %346 = vmatpush.bf16.msra.mxu0 0
    %347 = vmatpush.bf16.msra.mxu0 0
    %348 = vmatpush.bf16.msra.mxu0 0
    %349 = vmatpush.bf16.msra.mxu0 %v334
    %350 = vmatpush.bf16.msra.mxu0 %v333
    %351 = vmatmul.bf16.gmra.mxu0 %v338
    %v352 = vpop.f32.mrf.mxu0
    %v353 = vadd.f32 0.0, %v352
    %v354 = vpop.f32.mrf.mxu0
    %v355 = vadd.f32 0.0, %v354
    %356 = vmatmul.bf16.gmra.mxu0 %v341
    %v357 = vpop.f32.mrf.mxu0
    %v358 = vadd.f32 0.0, %v357
    %v359 = vpop.f32.mrf.mxu0
    %360 = vdwg.mxu0
    %364 = vrot.lane.b32.xlu0 %v353, 96
    %v365 = vpop.permute.xlu0 %364
    %366 = vrot.lane.b32.xlu0 %v355, 96
    %v367 = vpop.permute.xlu0 %366
    %368 = vrot.lane.b32.xlu0 %v358, 96
    %v369 = vpop.permute.xlu0 %368
    %v373 = vadd.f32 %v112, %v365
    %v374 = vadd.f32 %v130, %v365
    %v375 = vadd.f32 %v114, %v367
    %v376 = vadd.f32 %v132, %v367
    %v377 = vadd.f32 %v117, %v369
    %v378 = vadd.f32 %v135, %v369
    %v379 = vmax.f32 %v373, 0.0
    %v380 = vmax.f32 %v374, 0.0
    %v381 = vmax.f32 %v375, 0.0
    %v382 = vmax.f32 %v376, 0.0
    %v383 = vmax.f32 %v377, 0.0
    %v384 = vmax.f32 %v378, 0.0
    %v385 = vpack.c.bf16 %v380, %v379
    %v386 = vpack.c.bf16 %v382, %v381
    %v387 = vpack.c.bf16 %v384, %v383
    %391 = vrot.lane.b32.xlu0 %v385, 32
    %v392 = vpop.permute.xlu0 %391
    %393 = vrot.lane.b32.xlu0 %v386, 32
    %v394 = vpop.permute.xlu0 %393
    %395 = vrot.lane.b32.xlu0 %v387, 32
    %v396 = vpop.permute.xlu0 %395
    %400 = vst.msk [vmem:[#allocation2] sm:$0xf] %vm144, %v392
    %401 = vst.msk [vmem:[#allocation2 + $0x4] sm:$0xf] %vm144, %v394
    %402 = vst.msk [vmem:[#allocation2 + $0x8] sm:$0xf] %vm144, %v396
    %v403 = vrot.slane %v385, 4
    %v404 = vrot.slane %v386, 4
    %v405 = vrot.slane %v387, 4
    %409 = vst.msk [vmem:[#allocation2 + $0xc] sm:$0xf] %vm144, %v403
    %410 = vst.msk [vmem:[#allocation2 + $0x10] sm:$0xf] %vm144, %v404
    %411 = vst.msk [vmem:[#allocation2 + $0x14] sm:$0xf] %vm144, %v405
    %412 = vrot.lane.b32.xlu0 %v385, 96
    %v413 = vpop.permute.xlu0 %412
    %414 = vrot.lane.b32.xlu0 %v386, 96
    %v415 = vpop.permute.xlu0 %414
    %416 = vrot.lane.b32.xlu0 %v387, 96
    %v417 = vpop.permute.xlu0 %416
    %v418 = vrot.slane %v413, 4
    %v419 = vrot.slane %v415, 4
    %v420 = vrot.slane %v417, 4
    %424 = vst.msk [vmem:[#allocation2 + $0x18] sm:$0xf] %vm144, %v418
    %425 = vst.msk [vmem:[#allocation2 + $0x1c] sm:$0xf] %vm144, %v419
    %426 = vst.msk [vmem:[#allocation2 + $0x20] sm:$0xf] %vm144, %v420
    %v427 = vld [vmem:[#allocation2] sm:$0xf]
    %v428 = vld [vmem:[#allocation2 + $0x4] sm:$0xf]
    %v429 = vld [vmem:[#allocation2 + $0x8] sm:$0xf]
    %v430 = vld [vmem:[#allocation2 + $0xc] sm:$0xf]
    %v431 = vld [vmem:[#allocation2 + $0x10] sm:$0xf]
    %v432 = vld [vmem:[#allocation2 + $0x14] sm:$0xf]
    %v433 = vld [vmem:[#allocation2 + $0x18] sm:$0xf]
    %v434 = vld [vmem:[#allocation2 + $0x1c] sm:$0xf]
    %v435 = vld [vmem:[#allocation2 + $0x20] sm:$0xf]
    %v445 = vunpack.c.l.b16 %v427
    %v446 = vunpack.c.l.b16 %v428
    %v447 = vunpack.c.l.b16 %v429
    %v448 = vunpack.c.l.b16 %v430
    %v449 = vunpack.c.l.b16 %v431
    %v450 = vunpack.c.l.b16 %v432
    %v451 = vunpack.c.l.b16 %v433
    %v452 = vunpack.c.l.b16 %v434
    %v453 = vunpack.c.l.b16 %v435
    %v454 = vpack.c.b16 %v446, %v445
    %v455 = vpack.c.b16 %v448, %v447
    %v456 = vpack.c.b16 %v450, %v449
    %v457 = vpack.c.b16 %v452, %v451
    %v458 = vpack.c.b16 %v453, %v453
    %v464 = vsel %vm226, %v458, 0
    %466 = vmatpush.bf16.msra.mxu0 0
    %467 = vmatpush.bf16.msra.mxu0 0
    %468 = vmatpush.bf16.msra.mxu0 0
    %469 = vmatpush.bf16.msra.mxu0 %v464
    %470 = vmatpush.bf16.msra.mxu0 %v457
    %471 = vmatpush.bf16.msra.mxu0 %v456
    %472 = vmatpush.bf16.msra.mxu0 %v455
    %473 = vmatpush.bf16.msra.mxu0 %v454
    %474 = vmatmul.bf16.gmra.mxu0 %v221
    %v475 = vpop.f32.mrf.mxu0
    %v476 = vadd.f32 0.0, %v475
    %v477 = vpop.f32.mrf.mxu0
    %v478 = vadd.f32 0.0, %v477
    %479 = vmatmul.bf16.gmra.mxu0 %v224
    %v480 = vpop.f32.mrf.mxu0
    %v481 = vadd.f32 0.0, %v480
    %v482 = vpop.f32.mrf.mxu0
    %483 = vdwg.mxu0
    %v484 = vld [vmem:[%s7] sm:$0x1]
    %v485 = vld [vmem:[%s8] sm:$0x1]
    %v486 = vsel %vm250, %v476, 0.0
    %v487 = vsel %vm250, %v478, 0.0
    %v488 = vadd.f32 %v486, %v487
    %v489 = vsel %vm250, %v481, 0.0
    %v490 = vadd.f32 %v488, %v489
    %v491 = vrot.slane %v490, 4
    %v492 = vadd.f32 %v490, %v491
    %v493 = vrot.slane %v492, 2
    %v494 = vadd.f32 %v492, %v493
    %v495 = vrot.slane %v494, 1
    %v496 = vadd.f32 %v494, %v495
    %v497 = vmul.f32 %v496, 0.041666668
    %v498 = vsub.f32 %v476, %v497
    %v499 = vsub.f32 %v478, %v497
    %v500 = vsub.f32 %v481, %v497
    %v501 = vmul.f32 %v498, %v498
    %v502 = vmul.f32 %v499, %v499
    %v503 = vmul.f32 %v500, %v500
    %v504 = vsel %vm250, %v501, 0.0
    %v505 = vsel %vm250, %v502, 0.0
    %v506 = vadd.f32 %v504, %v505
    %v507 = vsel %vm250, %v503, 0.0
    %v508 = vadd.f32 %v506, %v507
    %v509 = vrot.slane %v508, 4
    %v510 = vadd.f32 %v508, %v509
    %v511 = vrot.slane %v510, 2
    %v512 = vadd.f32 %v510, %v511
    %v513 = vrot.slane %v512, 1
    %v514 = vadd.f32 %v512, %v513
    %v515 = vmul.f32 %v514, 0.041666668
    %v516 = vadd.f32 %v515, 1e-05
    %v517 = vrsqrt.pop %v516
    %v518 = vmul.f32 %v517, %v516
    %v519 = vmul.f32 %v518, %v517
    %v520 = vmul.f32 0.5, %v519
    %v521 = vsub.f32 1.5, %v520
    %v522 = vmul.f32 %v517, %v521
    %vm523 = vweird.f32 %v516
    %vm524 = vweird.f32 %v517
    %vm525 = vmor %vm523, %vm524
    %v526 = vsel %vm525, %v517, %v522
    %v527 = vmul.f32 %v498, %v526
    %v528 = vmul.f32 %v499, %v526
    %v529 = vmul.f32 %v500, %v526
    %v531 = vperm.slane %v484, 0
    %v533 = vmul.f32 %v527, %v531
    %v534 = vmul.f32 %v528, %v531
    %v535 = vmul.f32 %v529, %v531
    %v537 = vperm.slane %v485, 0
    %v539 = vadd.f32 %v533, %v537
    %v540 = vadd.f32 %v534, %v537
    %v541 = vadd.f32 %v535, %v537
    %v542 = vmax.f32 %v539, 0.0
    %v543 = vmax.f32 %v540, 0.0
    %v544 = vmax.f32 %v541, 0.0
    %v545 = vpack.c.bf16 %v542, %v542
    %v546 = vpack.c.bf16 %v543, %v543
    %v547 = vpack.c.bf16 %v544, %v544
    %551 = vrot.lane.b32.xlu0 %v542, 32
    %v552 = vpop.permute.xlu0 %551
    %553 = vrot.lane.b32.xlu0 %v543, 32
    %v554 = vpop.permute.xlu0 %553
    %555 = vrot.lane.b32.xlu0 %v544, 32
    %v556 = vpop.permute.xlu0 %555
    %v560 = vsel %vm250, %v307, %v552
    %v561 = vsel %vm250, %v308, %v554
    %v562 = vsel %vm250, %v309, %v556
    %vm563 = vcmask 523264
    %v564 = vsel %vm563, %v560, 0.0
    %v565 = vsel %vm563, %v561, 0.0
    %v566 = vsel %vm563, %v562, 0.0
    %567 = vst [vmem:[#allocation8] sm:$0xff] %v564
    %568 = vst [vmem:[#allocation8 + $0x8] sm:$0xff] %v565
    %569 = vst [vmem:[#allocation8 + $0x10] sm:$0xff] %v566
    %v573 = vunpack.c.l.b16 %v545
    %v574 = vunpack.c.l.b16 %v546
    %v575 = vunpack.c.l.b16 %v547
    %v576 = vpack.c.b16 %v574, %v573
    %v577 = vpack.c.b16 %v575, %v575
    %578 = vrot.lane.b32.xlu0 %v576, 32
    %v579 = vpop.permute.xlu0 %578
    %580 = vrot.lane.b32.xlu0 %v577, 32
    %v581 = vpop.permute.xlu0 %580
    %v583 = vsel %vm250, %v323, %v579
    %v585 = vsel %vm250, %v324, %v581
    %v587 = vsel %vm563, %v583, 0
    %v589 = vsel %vm563, %v585, 0
    %v590 = vld [vmem:[%s2] sm:$0x3]
    %vm591 = vcmask 195584
    %v593 = vsel %vm591, %v590, 0
    %v595 = vsel %vm226, %v589, 0
    %597 = vmatpush.bf16.msra.mxu0 0
    %598 = vmatpush.bf16.msra.mxu0 0
    %599 = vmatpush.bf16.msra.mxu0 0
    %600 = vmatpush.bf16.msra.mxu0 0
    %601 = vmatpush.bf16.msra.mxu0 0
    %602 = vmatpush.bf16.msra.mxu0 0
    %603 = vmatpush.bf16.msra.mxu0 %v595
    %604 = vmatpush.bf16.msra.mxu0 %v587
    %605 = vmatmul.bf16.gmra.mxu0 %v593
    %v606 = vpop.f32.mrf.mxu0
    %v607 = vadd.f32 0.0, %v606
    %v608 = vpop.f32.mrf.mxu0
    %609 = vdwg.mxu0
    %610 = vst [vmem:[#allocation9] sm:$0xf] %v607
    // Predicated region
    $region46: #{tpu_custom_call.1} parent=1 // pred_check
      _
    $region47: #{tpu_custom_call.1} parent=1 // pred_check_branch
      %612 = sbr.rel (0) target = $region49
    $region48: #{tpu_custom_call.1} parent=1 // pred_region
      %614 = vsyncadd [#allocation5], 0
      %s615 = sshll.u32 [#allocation8], 4
      %s616 = int_to_ptr.vmem [resolvable:$true] %s615
      %s617 = sshll.u32 %s9, 4
      %s618 = int_to_ptr.hbm [resolvable:$true] %s617
      %623 = dma.vmem_to_hbm [thread:$0]  %s616, 384, %s618, [#allocation5], 128, 128, 8
    $region49: #{tpu_custom_call.1} parent=1 // pred_fallthru
      _
    // Predicated region
    $region50: #{tpu_custom_call.1} parent=1 // pred_check
      _
    $region51: #{tpu_custom_call.1} parent=1 // pred_check_branch
      %625 = sbr.rel (0) target = $region53
    $region52: #{tpu_custom_call.1} parent=1 // pred_region
      %627 = vsyncadd [#allocation10], 0
      %s629 = sshll.u32 [#allocation9], 4
      %s630 = int_to_ptr.vmem [resolvable:$true] %s629
      %s631 = sshll.u32 %s10, 4
      %s632 = int_to_ptr.hbm [resolvable:$true] %s631
      %634 = dma.vmem_to_hbm [thread:$0]  %s630, 64, %s632, [#allocation10]
    $region53: #{tpu_custom_call.1} parent=1 // pred_fallthru
      _
    // Predicated region
    $region54: #{tpu_custom_call.1} parent=1 // pred_check
      _
    $region55: #{tpu_custom_call.1} parent=1 // pred_check_branch
      %636 = sbr.rel (0) target = $region57
    $region56: #{tpu_custom_call.1} parent=1 // pred_region
      %638 = dma.done [#allocation5], 384
    $region57: #{tpu_custom_call.1} parent=1 // pred_fallthru
      _
    // Predicated region
    $region58: #{tpu_custom_call.1} parent=1 // pred_check
      _
    $region59: #{tpu_custom_call.1} parent=1 // pred_check_branch
      %640 = sbr.rel (0) target = $region61
    $region60: #{tpu_custom_call.1} parent=1 // pred_region
      %642 = dma.done [#allocation10], 64
    $region61: #{tpu_custom_call.1} parent=1 // pred_fallthru
      _
    %643 = vsyncpa [#allocation4], 1
    %644 = vsyncpa [#allocation7], 1
    %645 = vsyncpa [#allocation5], 1
    %646 = vsyncpa [#allocation10], 1

</llo_original>
